<compile_context>
chip_gen: v5e
topology: v5e:2x2
jax: 0.10.0
libtpu: 0.0.40
codegen_flags: <defaults>
</compile_context>

<pallas_src>
import functools
import math

import jax
import jax.numpy as jnp
from jax.experimental import pallas as pl
from jax.experimental.pallas import tpu as pltpu

LANE = 128


def _loc_net_kernel(std, out_size, h_ref, w1_ref, b1_ref, w2_ref, b2_ref,
                    eps_ref, out_ref):
    """One batch-tile of the LocationNetwork forward.

    h_ref   [tb, In] f32     w1_ref [In, Hp] bf16    b1_ref [1, Hp] f32
    eps_ref [tb, O]  f32     w2_ref [Hp, Lp] bf16    b2_ref [1, Lp] f32
    out_ref [tb, Lp] f32  lane-dense packed output:
        lanes [0, O) = l_t (clamped rsample), lane O = log_pi, rest = 0.
    """
    f32, bf16 = jnp.float32, jnp.bfloat16

    # feat = relu(h @ W1 + b1): bf16 operands, f32 MXU accumulation.
    feat = jnp.maximum(
        jnp.dot(h_ref[...].astype(bf16), w1_ref[...],
                preferred_element_type=f32) + b1_ref[...], 0.0)

    # mu = tanh(feat @ W2 + b2); padded lanes stay exactly 0 (tanh(0) = 0).
    mu = jnp.tanh(
        jnp.dot(feat.astype(bf16), w2_ref[...],
                preferred_element_type=f32) + b2_ref[...])

    # log_pi directly from eps: (l_raw - mu)/std == eps exactly, so
    #   log_pi = -0.5 * sum(eps^2) + O * (-log std - 0.5 * log 2pi).
    # Algebraically identical to Normal(mu, std).log_prob(l_raw).sum(-1)
    # (differs from the literal PyTorch evaluation only at the ~1-ulp level);
    # keeps log_pi off the MXU/EUP chain and reduces over O lanes, not 128.
    eps = eps_ref[...]                                     # [tb, O] f32
    log_const = out_size * (-math.log(std) - 0.5 * math.log(2.0 * math.pi))
    log_pi = -0.5 * jnp.sum(eps * eps, axis=1, keepdims=True) + log_const

    # Scatter the O (tiny, static) eps columns into the lane-padded layout
    # in-kernel; no wrapper-side [B, 128] eps slab ever touches HBM.
    lane = jax.lax.broadcasted_iota(jnp.int32, mu.shape, 1)
    eps_pad = jnp.zeros_like(mu)
    for i in range(out_size):
        eps_pad = jnp.where(lane == i, eps[:, i:i + 1], eps_pad)

    # rsample, clamped for the returned location; padded lanes stay 0.
    l_t = jnp.clip(mu + std * eps_pad, -1.0, 1.0)

    # One unmasked 128-lane store: lanes [0, O) = l_t, lane O = log_pi.
    out_ref[...] = jnp.where(lane == out_size, log_pi, l_t)


def _default_block_b(batch):
    """Batch tile: single block for tiny batches; otherwise the largest
    multiple-of-8 divisor of `batch` <= min(batch // 2, 512), so the grid has
    >= 2 pipelined steps (DMA/compute overlap, both v7x TCs busy)."""
    if batch <= 256:
        return batch
    cap = min(batch // 2, 512)
    best = None
    for tb in range(8, cap + 1, 8):
        if batch % tb == 0:
            best = tb
    return best if best is not None else batch


def location_network_forward(h_t, w1, b1, w2, b2, eps, std, *, block_b=None):
    """LocationNetwork forward pass.

    h_t: [B, In] f32    hidden state
    w1:  [In, Hp] bf16  fc weight, transposed, hidden width zero-padded to 128
    b1:  [1, Hp]  f32
    w2:  [Hp, Lp] bf16  fc_lt weight, output width zero-padded (Lp >= O+1)
    b2:  [1, Lp]  f32
    eps: [B, O]   f32   standard-normal noise for the reparameterized sample
    std: Python float
    Returns (log_pi [B], l_t [B, O]).
    """
    B, In = h_t.shape
    Hp = w1.shape[1]
    Lp = w2.shape[1]
    O = eps.shape[1]

    assert w2.shape[0] == Hp and b1.shape == (1, Hp) and b2.shape == (1, Lp)
    assert Lp >= O + 1, "padded output width must leave a lane for log_pi"
    assert eps.shape[0] == B

    tb = _default_block_b(B) if block_b is None else block_b
    assert B % tb == 0, "batch must be divisible by the batch tile"
    assert tb == B or tb % 8 == 0, "batch tile must equal B or be a multiple of 8"
    grid = (B // tb,)

    # VMEM per step ~= 2*tb*(In + O + Lp)*4 B (double-buffered activations)
    # + ~50 KiB single-buffered bf16 weights: tiny here.  If block_b is scaled
    # to thousands of rows, keep it under the scoped default (16 MiB v5e /
    # 32 MiB v6e/v7x) or raise vmem_limit_bytes in CompilerParams.
    kernel = functools.partial(_loc_net_kernel, float(std), O)
    invariant = pl.Buffered(1)   # single-buffer grid-invariant weights/biases

    packed = pl.pallas_call(
        kernel,
        grid=grid,
        in_specs=[
            pl.BlockSpec((tb, In), lambda i: (i, 0)),                        # h_t
            pl.BlockSpec((In, Hp), lambda i: (0, 0), pipeline_mode=invariant),  # W1
            pl.BlockSpec((1, Hp), lambda i: (0, 0), pipeline_mode=invariant),   # b1
            pl.BlockSpec((Hp, Lp), lambda i: (0, 0), pipeline_mode=invariant),  # W2
            pl.BlockSpec((1, Lp), lambda i: (0, 0), pipeline_mode=invariant),   # b2
            pl.BlockSpec((tb, O), lambda i: (i, 0)),                         # eps
        ],
        out_specs=pl.BlockSpec((tb, Lp), lambda i: (i, 0)),
        out_shape=jax.ShapeDtypeStruct((B, Lp), jnp.float32),
        compiler_params=pltpu.CompilerParams(
            dimension_semantics=("parallel",)),  # batch shards across v7x TCs
    )(h_t, w1, b1, w2, b2, eps)

    # Unpack the lane-dense slab.
    return packed[:, O], packed[:, :O]   # log_pi: [B], l_t: [B, O]


def init_params(key, input_size, output_size, lane=LANE):
    """PyTorch nn.Linear-style uniform(+/- 1/sqrt(fan_in)) init.  Weights are
    stored transposed ([in, out]), zero-padded so hidden/output widths are
    lane-dense (with a lane reserved for log_pi), and cast to bf16 (matmul
    operands only; biases stay f32)."""
    hid = input_size // 2
    hid_p = max(-(-hid // lane) * lane, lane)
    out_p = max(-(-(output_size + 1) // lane) * lane, lane)
    k1, k2, k3, k4 = jax.random.split(key, 4)
    bound1 = 1.0 / math.sqrt(input_size)
    bound2 = 1.0 / math.sqrt(hid)
    w1 = jnp.zeros((input_size, hid_p), jnp.float32).at[:, :hid].set(
        jax.random.uniform(k1, (input_size, hid), jnp.float32, -bound1, bound1))
    b1 = jnp.zeros((1, hid_p), jnp.float32).at[:, :hid].set(
        jax.random.uniform(k2, (1, hid), jnp.float32, -bound1, bound1))
    w2 = jnp.zeros((hid_p, out_p), jnp.float32).at[:hid, :output_size].set(
        jax.random.uniform(k3, (hid, output_size), jnp.float32, -bound2, bound2))
    b2 = jnp.zeros((1, out_p), jnp.float32).at[:, :output_size].set(
        jax.random.uniform(k4, (1, output_size), jnp.float32, -bound2, bound2))
    return w1.astype(jnp.bfloat16), b1, w2.astype(jnp.bfloat16), b2, hid


if __name__ == "__main__":
    # Small shapes consistent with the module: hidden state -> 2-D location.
    batch = 2
    input_size = 32
    output_size = 2
    std = 0.17

    key = jax.random.PRNGKey(0)
    k_h, k_p, k_eps = jax.random.split(key, 3)

    h_t = jax.random.normal(k_h, (batch, input_size), jnp.float32)
    w1, b1, w2, b2, hid = init_params(k_p, input_size, output_size)
    # Standard-normal noise for rsample (could instead be drawn in-kernel via
    # pltpu.prng_seed / pltpu.prng_random_bits so it never touches HBM).
    eps = jax.random.normal(k_eps, (batch, output_size), jnp.float32)

    log_pi, l_t = location_network_forward(h_t, w1, b1, w2, b2, eps, std)
    jax.block_until_ready((log_pi, l_t))

    # Pure-JAX reference of the same math (same bf16 matmul operands, f32
    # accumulation) on the logical (unpadded) weights.
    w1r, b1r = w1[:, :hid], b1[:, :hid]
    w2r, b2r = w2[:hid, :output_size], b2[:, :output_size]
    feat_ref = jnp.maximum(
        jnp.dot(h_t.astype(jnp.bfloat16), w1r,
                preferred_element_type=jnp.float32) + b1r, 0.0)
    mu_ref = jnp.tanh(
        jnp.dot(feat_ref.astype(jnp.bfloat16), w2r,
                preferred_element_type=jnp.float32) + b2r)
    l_raw_ref = mu_ref + std * eps
    lp_ref = (-0.5 * ((l_raw_ref - mu_ref) / std) ** 2
              - math.log(std) - 0.5 * math.log(2.0 * math.pi)).sum(axis=1)
    lt_ref = jnp.clip(l_raw_ref, -1.0, 1.0)

    assert log_pi.shape == (batch,)
    assert l_t.shape == (batch, output_size)
    assert jnp.allclose(log_pi, lp_ref, atol=1e-4, rtol=1e-4)
    assert jnp.allclose(l_t, lt_ref, atol=1e-4, rtol=1e-4)

    print("KERNEL_OK")
</pallas_src>

<mosaic_0001>
module attributes {stable_mosaic.version = 11 : i64} {
  func.func @_loc_net_kernel(%arg0: i32, %arg1: memref<2x32xf32, #tpu.memory_space<vmem>>, %arg2: memref<32x128xbf16, #tpu.memory_space<vmem>>, %arg3: memref<1x128xf32, #tpu.memory_space<vmem>>, %arg4: memref<128x128xbf16, #tpu.memory_space<vmem>>, %arg5: memref<1x128xf32, #tpu.memory_space<vmem>>, %arg6: memref<2x2xf32, #tpu.memory_space<vmem>>, %arg7: memref<2x128xf32, #tpu.memory_space<vmem>>) attributes {dimension_semantics = [#tpu.dimension_semantics<parallel>], iteration_bounds = array<i64: 1>, scalar_prefetch = 0 : i64, scratch_operands = 0 : i64, tpu.core_type = #tpu.core_type<tc>, window_params = [{transform_indices = @transform_0, window_bounds = array<i64: 2, 32>}, {pipeline_mode = #tpu.pipeline_mode<synchronous>, transform_indices = @transform_1, window_bounds = array<i64: 32, 128>}, {pipeline_mode = #tpu.pipeline_mode<synchronous>, transform_indices = @transform_2, window_bounds = array<i64: 1, 128>}, {pipeline_mode = #tpu.pipeline_mode<synchronous>, transform_indices = @transform_3, window_bounds = array<i64: 128, 128>}, {pipeline_mode = #tpu.pipeline_mode<synchronous>, transform_indices = @transform_4, window_bounds = array<i64: 1, 128>}, {transform_indices = @transform_5, window_bounds = array<i64: 2, 2>}, {transform_indices = @transform_6, window_bounds = array<i64: 2, 128>}]} {
    %c0 = arith.constant 0 : index
    %c0_0 = arith.constant 0 : index
    %0 = vector.load %arg1[%c0, %c0_0] : memref<2x32xf32, #tpu.memory_space<vmem>>, vector<2x32xf32>
    %1 = arith.truncf %0 : vector<2x32xf32> to vector<2x32xbf16>
    %c0_1 = arith.constant 0 : index
    %c0_2 = arith.constant 0 : index
    %2 = vector.load %arg2[%c0_1, %c0_2] : memref<32x128xbf16, #tpu.memory_space<vmem>>, vector<32x128xbf16>
    %cst = arith.constant dense<0.000000e+00> : vector<2x128xf32>
    %3 = tpu.matmul %1, %2, %cst {dimension_numbers = #tpu.dot_dimension_numbers<[1], [0], [0], [1], [0, 0, 1, 1], [], []>} : vector<2x32xbf16>, vector<32x128xbf16>, vector<2x128xf32> -> vector<2x128xf32>
    %c0_3 = arith.constant 0 : index
    %c0_4 = arith.constant 0 : index
    %4 = vector.load %arg3[%c0_3, %c0_4] : memref<1x128xf32, #tpu.memory_space<vmem>>, vector<1x128xf32>
    %5 = vector.broadcast %4 : vector<1x128xf32> to vector<2x128xf32>
    %6 = arith.addf %3, %5 : vector<2x128xf32>
    %cst_5 = arith.constant 0.000000e+00 : f32
    %7 = vector.broadcast %cst_5 : f32 to vector<2x128xf32>
    %8 = arith.maximumf %6, %7 : vector<2x128xf32>
    %9 = arith.truncf %8 : vector<2x128xf32> to vector<2x128xbf16>
    %c0_6 = arith.constant 0 : index
    %c0_7 = arith.constant 0 : index
    %10 = vector.load %arg4[%c0_6, %c0_7] : memref<128x128xbf16, #tpu.memory_space<vmem>>, vector<128x128xbf16>
    %cst_8 = arith.constant dense<0.000000e+00> : vector<2x128xf32>
    %11 = tpu.matmul %9, %10, %cst_8 {dimension_numbers = #tpu.dot_dimension_numbers<[1], [0], [0], [1], [0, 0, 1, 1], [], []>} : vector<2x128xbf16>, vector<128x128xbf16>, vector<2x128xf32> -> vector<2x128xf32>
    %c0_9 = arith.constant 0 : index
    %c0_10 = arith.constant 0 : index
    %12 = vector.load %arg5[%c0_9, %c0_10] : memref<1x128xf32, #tpu.memory_space<vmem>>, vector<1x128xf32>
    %13 = vector.broadcast %12 : vector<1x128xf32> to vector<2x128xf32>
    %14 = arith.addf %11, %13 : vector<2x128xf32>
    %15 = math.tanh %14 : vector<2x128xf32>
    %c0_11 = arith.constant 0 : index
    %c0_12 = arith.constant 0 : index
    %16 = vector.load %arg6[%c0_11, %c0_12] : memref<2x2xf32, #tpu.memory_space<vmem>>, vector<2x2xf32>
    %17 = arith.mulf %16, %16 : vector<2x2xf32>
    %cst_13 = arith.constant dense<0.000000e+00> : vector<2xf32>
    %18 = vector.multi_reduction <add>, %17, %cst_13 [1] : vector<2x2xf32> to vector<2xf32>
    %19 = vector.shape_cast %18 : vector<2xf32> to vector<2x1xf32>
    %cst_14 = arith.constant -5.000000e-01 : f32
    %20 = vector.broadcast %cst_14 : f32 to vector<2x1xf32>
    %21 = arith.mulf %20, %19 : vector<2x1xf32>
    %cst_15 = arith.constant 1.70603657 : f32
    %22 = vector.broadcast %cst_15 : f32 to vector<2x1xf32>
    %23 = arith.addf %21, %22 : vector<2x1xf32>
    %24 = tpu.iota {dimensions = array<i32: 1>} : vector<2x128xi32>
    %cst_16 = arith.constant 0.000000e+00 : f32
    %25 = vector.broadcast %cst_16 : f32 to vector<2x128xf32>
    %c0_i32 = arith.constant 0 : i32
    %26 = vector.broadcast %c0_i32 : i32 to vector<2x128xi32>
    %27 = arith.cmpi eq, %24, %26 : vector<2x128xi32>
    %28 = vector.extract_strided_slice %16 {offsets = [0, 0], sizes = [2, 1], strides = [1, 1]} : vector<2x2xf32> to vector<2x1xf32>
    %29 = vector.shape_cast %28 : vector<2x1xf32> to vector<2x1xf32>
    %30 = vector.broadcast %29 : vector<2x1xf32> to vector<2x128xf32>
    %31 = arith.select %27, %30, %25 : vector<2x128xi1>, vector<2x128xf32>
    %c1_i32 = arith.constant 1 : i32
    %32 = vector.broadcast %c1_i32 : i32 to vector<2x128xi32>
    %33 = arith.cmpi eq, %24, %32 : vector<2x128xi32>
    %34 = vector.extract_strided_slice %16 {offsets = [0, 1], sizes = [2, 1], strides = [1, 1]} : vector<2x2xf32> to vector<2x1xf32>
    %35 = vector.shape_cast %34 : vector<2x1xf32> to vector<2x1xf32>
    %36 = vector.broadcast %35 : vector<2x1xf32> to vector<2x128xf32>
    %37 = arith.select %33, %36, %31 : vector<2x128xi1>, vector<2x128xf32>
    %cst_17 = arith.constant 1.700000e-01 : f32
    %38 = vector.broadcast %cst_17 : f32 to vector<2x128xf32>
    %39 = arith.mulf %38, %37 : vector<2x128xf32>
    %40 = arith.addf %15, %39 : vector<2x128xf32>
    %cst_18 = arith.constant -1.000000e+00 : f32
    %cst_19 = arith.constant 1.000000e+00 : f32
    %41 = vector.broadcast %cst_18 : f32 to vector<2x128xf32>
    %42 = arith.maximumf %41, %40 : vector<2x128xf32>
    %43 = vector.broadcast %cst_19 : f32 to vector<2x128xf32>
    %44 = arith.minimumf %43, %42 : vector<2x128xf32>
    %c2_i32 = arith.constant 2 : i32
    %45 = vector.broadcast %c2_i32 : i32 to vector<2x128xi32>
    %46 = arith.cmpi eq, %24, %45 : vector<2x128xi32>
    %47 = vector.shape_cast %23 : vector<2x1xf32> to vector<2x1xf32>
    %48 = vector.broadcast %47 : vector<2x1xf32> to vector<2x128xf32>
    %49 = arith.select %46, %48, %44 : vector<2x128xi1>, vector<2x128xf32>
    %c0_20 = arith.constant 0 : index
    %c0_21 = arith.constant 0 : index
    %50 = vector.load %arg7[%c0_20, %c0_21] : memref<2x128xf32, #tpu.memory_space<vmem>>, vector<2x128xf32>
    tpu.vector_store %arg7[%c0_20, %c0_21], %49 {strides = array<i32>} : memref<2x128xf32, #tpu.memory_space<vmem>>, vector<2x128xf32>,
    return
  }
  func.func @transform_0(%arg0: i32) -> (i32, i32) {
    %c0_i32 = arith.constant 0 : i32
    %c0_i32_0 = arith.constant 0 : i32
    return %arg0, %c0_i32 : i32, i32
  }
  func.func @transform_1(%arg0: i32) -> (i32, i32) {
    %c0_i32 = arith.constant 0 : i32
    %c0_i32_0 = arith.constant 0 : i32
    %c0_i32_1 = arith.constant 0 : i32
    return %c0_i32, %c0_i32_0 : i32, i32
  }
  func.func @transform_2(%arg0: i32) -> (i32, i32) {
    %c0_i32 = arith.constant 0 : i32
    %c0_i32_0 = arith.constant 0 : i32
    %c0_i32_1 = arith.constant 0 : i32
    return %c0_i32, %c0_i32_0 : i32, i32
  }
  func.func @transform_3(%arg0: i32) -> (i32, i32) {
    %c0_i32 = arith.constant 0 : i32
    %c0_i32_0 = arith.constant 0 : i32
    %c0_i32_1 = arith.constant 0 : i32
    return %c0_i32, %c0_i32_0 : i32, i32
  }
  func.func @transform_4(%arg0: i32) -> (i32, i32) {
    %c0_i32 = arith.constant 0 : i32
    %c0_i32_0 = arith.constant 0 : i32
    %c0_i32_1 = arith.constant 0 : i32
    return %c0_i32, %c0_i32_0 : i32, i32
  }
  func.func @transform_5(%arg0: i32) -> (i32, i32) {
    %c0_i32 = arith.constant 0 : i32
    %c0_i32_0 = arith.constant 0 : i32
    return %arg0, %c0_i32 : i32, i32
  }
  func.func @transform_6(%arg0: i32) -> (i32, i32) {
    %c0_i32 = arith.constant 0 : i32
    %c0_i32_0 = arith.constant 0 : i32
    return %arg0, %c0_i32 : i32, i32
  }
}

</mosaic_0001>

<llo_original>
// kernel: tpu_custom_call.1
$region0: #{tpu_custom_call.1}
  #allocation0 [shape = 'u32[]', space=smem, size = 0x4, offset = 0x4, fixed_abs, tag = 'smem constant byte address 0x4 - core index']
  #allocation1 [shape = 'u32[72,128]{1,0:T(1,128)}', space=vmem, size = 0x9000, scoped, tag = 'internal scratch']
  %s0 = inlined_call_operand.hbm [shape: f32[2,32], index: 0, kind: input, shape index: {}]
  %s1 = inlined_call_operand.hbm [shape: bf16[32,128], index: 1, kind: input, shape index: {}]
  %s2 = inlined_call_operand.vmem [shape: f32[1,128], index: 2, kind: input, shape index: {}]
  %s3 = inlined_call_operand.hbm [shape: bf16[128,128], index: 3, kind: input, shape index: {}]
  %s4 = inlined_call_operand.hbm [shape: f32[1,128], index: 4, kind: input, shape index: {}]
  %s5 = inlined_call_operand.vmem [shape: f32[2,2], index: 5, kind: input, shape index: {}]
  %s6 = inlined_call_operand.hbm [shape: f32[2,128], index: 6, kind: output, shape index: {}]
  %s7 = sld [smem:[#allocation0]]
  $region50: #{tpu_custom_call.1} parent=0
    _
  %s9 = ssub.s32 1, %s7
  %s10 = scalar_select 0, %s9, %s7
  $region1: #{tpu_custom_call.1} parent=0
    #allocation2 [shape = 'u8[1024]{0}', space=vmem, size = 0x400, scoped, tag = 'input window, operand 0, single buffered']
    #allocation3 [shape = 's32[1]{0}', space=sflag, size = 0x4, scoped, tag = 'scoped memory for tpu_custom_call.1']
    #allocation4 [shape = 's32[1]{0}', space=sflag, size = 0x4, scoped, tag = 'scoped memory for tpu_custom_call.1']
    #allocation5 [shape = 'u8[8192]{0}', space=vmem, size = 0x2000, scoped, tag = 'input window, operand 1, single buffered']
    #allocation6 [shape = 's32[1]{0}', space=sflag, size = 0x4, scoped, tag = 'scoped memory for tpu_custom_call.1']
    #allocation7 [shape = 'u8[32768]{0}', space=vmem, size = 0x8000, scoped, tag = 'input window, operand 3, single buffered']
    #allocation8 [shape = 'u8[512]{0}', space=vmem, size = 0x400, scoped, tag = 'input window, operand 4, single buffered']
    #allocation9 [shape = 's32[1]{0}', space=sflag, size = 0x4, scoped, tag = 'scoped memory for tpu_custom_call.1']
    #allocation10 [shape = 'u8[1024]{0}', space=vmem, size = 0x400, scoped, tag = 'output window, operand 0, single buffered']
    %11 = vsyncpa [#allocation3], 0
    %12 = vsyncpa [#allocation6], 0
    %13 = vsyncpa [#allocation9], 0
    %14 = vsyncpa [#allocation4], 0
    // Predicated region
    $region2: #{tpu_custom_call.1} parent=1 // pred_check
      _
    $region3: #{tpu_custom_call.1} parent=1 // pred_check_branch
      %16 = sbr.rel (0) target = $region5
    $region4: #{tpu_custom_call.1} parent=1 // pred_region
      %18 = vsyncadd [#allocation3], 0
      %s20 = sshll.u32 %s0, 4
      %s21 = int_to_ptr.hbm [resolvable:$true] %s20
      %s22 = sshll.u32 [#allocation2], 4
      %s23 = int_to_ptr.vmem [resolvable:$true] %s22
      %25 = dma.hbm_to_vmem [thread:$0]  %s21, 32, %s23, [#allocation3]
    $region5: #{tpu_custom_call.1} parent=1 // pred_fallthru
      _
    // Predicated region
    $region6: #{tpu_custom_call.1} parent=1 // pred_check
      _
    $region7: #{tpu_custom_call.1} parent=1 // pred_check_branch
      %27 = sbr.rel (0) target = $region9
    $region8: #{tpu_custom_call.1} parent=1 // pred_region
      %29 = vsyncadd [#allocation6], 0
      %s30 = sshll.u32 %s1, 4
      %s31 = int_to_ptr.hbm [resolvable:$true] %s30
      %s32 = sshll.u32 [#allocation5], 4
      %s33 = int_to_ptr.vmem [resolvable:$true] %s32
      %38 = dma.hbm_to_vmem [thread:$0]  %s31, 256, %s33, [#allocation6], 64, 64, 4
    $region9: #{tpu_custom_call.1} parent=1 // pred_fallthru
      _
    // Predicated region
    $region10: #{tpu_custom_call.1} parent=1 // pred_check
      _
    $region11: #{tpu_custom_call.1} parent=1 // pred_check_branch
      %40 = sbr.rel (0) target = $region13
    $region12: #{tpu_custom_call.1} parent=1 // pred_region
      _
    $region13: #{tpu_custom_call.1} parent=1 // pred_fallthru
      _
    // Predicated region
    $region14: #{tpu_custom_call.1} parent=1 // pred_check
      _
    $region15: #{tpu_custom_call.1} parent=1 // pred_check_branch
      %42 = sbr.rel (0) target = $region17
    $region16: #{tpu_custom_call.1} parent=1 // pred_region
      %44 = vsyncadd [#allocation6], 0
      %s45 = sshll.u32 %s3, 4
      %s46 = int_to_ptr.hbm [resolvable:$true] %s45
      %s47 = sshll.u32 [#allocation7], 4
      %s48 = int_to_ptr.vmem [resolvable:$true] %s47
      %53 = dma.hbm_to_vmem [thread:$0]  %s46, 1024, %s48, [#allocation6], 64, 64, 4
    $region17: #{tpu_custom_call.1} parent=1 // pred_fallthru
      _
    // Predicated region
    $region18: #{tpu_custom_call.1} parent=1 // pred_check
      _
    $region19: #{tpu_custom_call.1} parent=1 // pred_check_branch
      %55 = sbr.rel (0) target = $region21
    $region20: #{tpu_custom_call.1} parent=1 // pred_region
      %57 = vsyncadd [#allocation9], 0
      %s59 = sshll.u32 %s4, 4
      %s60 = int_to_ptr.hbm [resolvable:$true] %s59
      %s61 = sshll.u32 [#allocation8], 4
      %s62 = int_to_ptr.vmem [resolvable:$true] %s61
      %64 = dma.hbm_to_vmem [thread:$0]  %s60, 16, %s62, [#allocation9]
    $region21: #{tpu_custom_call.1} parent=1 // pred_fallthru
      _
    // Predicated region
    $region22: #{tpu_custom_call.1} parent=1 // pred_check
      _
    $region23: #{tpu_custom_call.1} parent=1 // pred_check_branch
      %66 = sbr.rel (0) target = $region25
    $region24: #{tpu_custom_call.1} parent=1 // pred_region
      _
    $region25: #{tpu_custom_call.1} parent=1 // pred_fallthru
      _
    // Predicated region
    $region26: #{tpu_custom_call.1} parent=1 // pred_check
      _
    $region27: #{tpu_custom_call.1} parent=1 // pred_check_branch
      %68 = sbr.rel (0) target = $region29
    $region28: #{tpu_custom_call.1} parent=1 // pred_region
      %70 = dma.done [#allocation3], 32
    $region29: #{tpu_custom_call.1} parent=1 // pred_fallthru
      _
    // Predicated region
    $region30: #{tpu_custom_call.1} parent=1 // pred_check
      _
    $region31: #{tpu_custom_call.1} parent=1 // pred_check_branch
      %72 = sbr.rel (0) target = $region33
    $region32: #{tpu_custom_call.1} parent=1 // pred_region
      %74 = dma.done [#allocation6], 256
    $region33: #{tpu_custom_call.1} parent=1 // pred_fallthru
      _
    // Predicated region
    $region34: #{tpu_custom_call.1} parent=1 // pred_check
      _
    $region35: #{tpu_custom_call.1} parent=1 // pred_check_branch
      %76 = sbr.rel (0) target = $region37
    $region36: #{tpu_custom_call.1} parent=1 // pred_region
      %78 = dma.done [#allocation6], 1024
    $region37: #{tpu_custom_call.1} parent=1 // pred_fallthru
      _
    // Predicated region
    $region38: #{tpu_custom_call.1} parent=1 // pred_check
      _
    $region39: #{tpu_custom_call.1} parent=1 // pred_check_branch
      %80 = sbr.rel (0) target = $region41
    $region40: #{tpu_custom_call.1} parent=1 // pred_region
      %82 = dma.done [#allocation9], 16
    $region41: #{tpu_custom_call.1} parent=1 // pred_fallthru
      _
    %v84 = vld [vmem:[#allocation2] sm:$0x3]
    %v85 = vpack.c.bf16 %v84, %v84
    %v86 = vld [vmem:[#allocation5] sm:$0xf]
    %v87 = vld [vmem:[#allocation5 + $0x4] sm:$0xf]
    %v88 = vld [vmem:[#allocation5 + $0x8] sm:$0xf]
    %v89 = vld [vmem:[#allocation5 + $0xc] sm:$0xf]
    %v90 = vld [vmem:[%s2] sm:$0x1]
    %v92 = vperm.slane %v90, 0
    %v98 = vunpack.c.l.b16 %v86
    %v99 = vunpack.c.l.b16 %v87
    %v100 = vunpack.c.l.b16 %v88
    %v101 = vunpack.c.l.b16 %v89
    %v102 = vpack.c.b16 %v99, %v98
    %v103 = vpack.c.b16 %v101, %v100
    %vm106 = vcmask 261120
    %v108 = vsel %vm106, %v85, 0
    %110 = vmatpush.bf16.msra.mxu0 0
    %111 = vmatpush.bf16.msra.mxu0 0
    %112 = vmatpush.bf16.msra.mxu0 0
    %113 = vmatpush.bf16.msra.mxu0 0
    %114 = vmatpush.bf16.msra.mxu0 0
    %115 = vmatpush.bf16.msra.mxu0 0
    %116 = vmatpush.bf16.msra.mxu0 %v103
    %117 = vmatpush.bf16.msra.mxu0 %v102
    %118 = vmatmul.bf16.gmra.mxu0 %v108
    %v119 = vpop.f32.mrf.mxu0
    %v120 = vadd.f32 %v92, %v119
    %v121 = vpop.f32.mrf.mxu0
    %122 = vdwg.mxu0
    %v123 = vmax.f32 %v120, 0.0
    %v124 = vpack.c.bf16 %v123, %v123
    %v125 = vld [vmem:[#allocation7] sm:$0xf]
    %v126 = vld [vmem:[#allocation7 + $0x4] sm:$0xf]
    %v127 = vld [vmem:[#allocation7 + $0x8] sm:$0xf]
    %v128 = vld [vmem:[#allocation7 + $0xc] sm:$0xf]
    %v129 = vld [vmem:[#allocation7 + $0x10] sm:$0xf]
    %v130 = vld [vmem:[#allocation7 + $0x14] sm:$0xf]
    %v131 = vld [vmem:[#allocation7 + $0x18] sm:$0xf]
    %v132 = vld [vmem:[#allocation7 + $0x1c] sm:$0xf]
    %v133 = vld [vmem:[#allocation7 + $0x20] sm:$0xf]
    %v134 = vld [vmem:[#allocation7 + $0x24] sm:$0xf]
    %v135 = vld [vmem:[#allocation7 + $0x28] sm:$0xf]
    %v136 = vld [vmem:[#allocation7 + $0x2c] sm:$0xf]
    %v137 = vld [vmem:[#allocation7 + $0x30] sm:$0xf]
    %v138 = vld [vmem:[#allocation7 + $0x34] sm:$0xf]
    %v139 = vld [vmem:[#allocation7 + $0x38] sm:$0xf]
    %v140 = vld [vmem:[#allocation7 + $0x3c] sm:$0xf]
    %v141 = vld [vmem:[#allocation8] sm:$0x1]
    %v143 = vperm.slane %v141, 0
    %v161 = vunpack.c.l.b16 %v125
    %v162 = vunpack.c.l.b16 %v126
    %v163 = vunpack.c.l.b16 %v127
    %v164 = vunpack.c.l.b16 %v128
    %v165 = vunpack.c.l.b16 %v129
    %v166 = vunpack.c.l.b16 %v130
    %v167 = vunpack.c.l.b16 %v131
    %v168 = vunpack.c.l.b16 %v132
    %v169 = vunpack.c.l.b16 %v133
    %v170 = vunpack.c.l.b16 %v134
    %v171 = vunpack.c.l.b16 %v135
    %v172 = vunpack.c.l.b16 %v136
    %v173 = vunpack.c.l.b16 %v137
    %v174 = vunpack.c.l.b16 %v138
    %v175 = vunpack.c.l.b16 %v139
    %v176 = vunpack.c.l.b16 %v140
    %v177 = vpack.c.b16 %v162, %v161
    %v178 = vpack.c.b16 %v164, %v163
    %v179 = vpack.c.b16 %v166, %v165
    %v180 = vpack.c.b16 %v168, %v167
    %v181 = vpack.c.b16 %v170, %v169
    %v182 = vpack.c.b16 %v172, %v171
    %v183 = vpack.c.b16 %v174, %v173
    %v184 = vpack.c.b16 %v176, %v175
    %193 = vmatpush.bf16.msra.mxu0 %v184
    %194 = vmatpush.bf16.msra.mxu0 %v183
    %195 = vmatpush.bf16.msra.mxu0 %v182
    %196 = vmatpush.bf16.msra.mxu0 %v181
    %197 = vmatpush.bf16.msra.mxu0 %v180
    %198 = vmatpush.bf16.msra.mxu0 %v179
    %199 = vmatpush.bf16.msra.mxu0 %v178
    %200 = vmatpush.bf16.msra.mxu0 %v177
    %201 = vmatmul.bf16.gmra.mxu0 %v124
    %v202 = vpop.f32.mrf.mxu0
    %v203 = vadd.f32 %v143, %v202
    %v204 = vpop.f32.mrf.mxu0
    %205 = vdwg.mxu0
    %v206 = vtanh.pop %v203
    %v207 = vld [vmem:[%s5] sm:$0x3]
    %v208 = vmul.f32 %v207, %v207
    %vm209 = vcmask 9216
    %v210 = vsel %vm209, %v208, 0.0
    %211 = vadd.xlane.f32.xlu0 %v210
    %v212 = vpop.xlane.xlu0 %211
    %v213 = vmul.f32 %v212, -0.5
    %v214 = vadd.f32 %v213, 1.7060366
    %v215 = vlaneseq
    %v216 = vand.u32 %v215, 127
    %vm217 = vcmp.eq.s32.totalorder %v216, 0
    %219 = vset.pattern.permute.xlu0 0
    %220 = vperm.xlu0 %219, %v207
    %v221 = vpop.permute.xlu0 %220
    %v223 = vsel %vm217, %v221, 0.0
    %vm224 = vcmp.eq.s32.totalorder %v216, 1
    %225 = vset.pattern.permute.xlu0 1
    %226 = vperm.xlu0 %225, %v207
    %v227 = vpop.permute.xlu0 %226
    %v229 = vsel %vm224, %v227, %v223
    %v230 = vmul.f32 %v229, 0.17
    %v231 = vadd.f32 %v206, %v230
    %v232 = vmax.f32 %v231, -1.0
    %v233 = vmin.f32 %v232, 1.0
    %vm234 = vcmp.eq.s32.totalorder %v216, 2
    %v235 = vsel %vm234, %v214, %v233
    %236 = vst [vmem:[#allocation10] sm:$0x3] %v235
    // Predicated region
    $region42: #{tpu_custom_call.1} parent=1 // pred_check
      _
    $region43: #{tpu_custom_call.1} parent=1 // pred_check_branch
      %238 = sbr.rel (0) target = $region45
    $region44: #{tpu_custom_call.1} parent=1 // pred_region
      %240 = vsyncadd [#allocation4], 0
      %s242 = sshll.u32 [#allocation10], 4
      %s243 = int_to_ptr.vmem [resolvable:$true] %s242
      %s244 = sshll.u32 %s6, 4
      %s245 = int_to_ptr.hbm [resolvable:$true] %s244
      %247 = dma.vmem_to_hbm [thread:$0]  %s243, 32, %s245, [#allocation4]
    $region45: #{tpu_custom_call.1} parent=1 // pred_fallthru
      _
    // Predicated region
    $region46: #{tpu_custom_call.1} parent=1 // pred_check
      _
    $region47: #{tpu_custom_call.1} parent=1 // pred_check_branch
      %249 = sbr.rel (0) target = $region49
    $region48: #{tpu_custom_call.1} parent=1 // pred_region
      %251 = dma.done [#allocation4], 32
    $region49: #{tpu_custom_call.1} parent=1 // pred_fallthru
      _
    %252 = vsyncpa [#allocation3], 1
    %253 = vsyncpa [#allocation6], 1
    %254 = vsyncpa [#allocation9], 1
    %255 = vsyncpa [#allocation4], 1

</llo_original>
